<compile_context>
chip_gen: v7x
topology: tpu7x:2x2x1
jax: 0.10.0
libtpu: 0.0.40
codegen_flags: <defaults>
</compile_context>

<pallas_src>
from functools import partial

import numpy as np
import jax
import jax.numpy as jnp
from jax.experimental import pallas as pl
from jax.experimental.pallas import tpu as pltpu

DROPOUT_P = 0.3
# keep element  <=>  bits >= p * 2^32   (P(keep) = 1 - p)
_DROP_THRESHOLD = int(DROPOUT_P * (1 << 32))  # 1288490188, fits in uint32
_LANE = 128


def _gcn2_kernel(h_ref, bits_ref, adj_ref, w2_ref, b2_ref, out_ref, *, apply_dropout):
    """Dropout (integer-threshold mask) + second GraphConvolution, all in VMEM.

    h_ref   : (N, Dp)  relu(adj_n @ W1 + b1), feature dim padded to 128 lanes
    bits_ref: (N, Dp)  uint32 random bits (unused when apply_dropout=False)
    adj_ref : (N, N)   row-normalized adjacency
    w2_ref  : (Dp, Dp) second-layer weights (pre-scaled by 1/(1-p) when training)
    b2_ref  : (1, Dp)  second-layer bias
    out_ref : (N, Dp)
    """
    h = h_ref[...]

    if apply_dropout:
        # Pure integer threshold compare: one vcmp + one vsel per vreg.
        keep = bits_ref[...] >= jnp.uint32(_DROP_THRESHOLD)
        h = jnp.where(keep, h, 0.0)  # 1/(1-p) scale already folded into W2

    # gcn2: out = adj @ (h @ W2) + b2   (two dependent MXU matmuls, f32 accumulate)
    support = jnp.dot(h, w2_ref[...], preferred_element_type=jnp.float32)
    out_ref[...] = (
        jnp.dot(adj_ref[...], support, preferred_element_type=jnp.float32)
        + b2_ref[...]
    )


@partial(jax.jit, static_argnames=("training",))
def gcn1_forward(adj_n, w1, b1, w2, b2, key, *, training=True):
    """Full GCN_1 forward. adj_n: (N, N) row-normalized adjacency. Returns (N, emb_dim)."""
    n = adj_n.shape[0]
    d = w1.shape[1]
    d_pad = ((d + _LANE - 1) // _LANE) * _LANE  # pad feature dim to a lane multiple

    # ---- layer 1, hoisted out of the kernel (x == I, so it is weight-only) ------
    h = jnp.maximum(adj_n @ w1 + b1, 0.0)                       # (N, D)

    # ---- lane-dense padding of the feature dim ----------------------------------
    h_p = jnp.pad(h, ((0, 0), (0, d_pad - d)))                  # (N, Dp)
    w2_p = jnp.pad(w2, ((0, d_pad - d), (0, d_pad - d)))        # (Dp, Dp)
    b2_p = jnp.pad(b2, ((0, 0), (0, d_pad - d)))                # (1, Dp)
    if training:
        # fold the dropout 1/(1-p) rescale into W2 so the kernel only masks
        w2_p = w2_p * (1.0 / (1.0 - DROPOUT_P))

    # random bits for the dropout mask (generated outside the kernel; portable)
    bits = jax.random.bits(key, (n, d_pad), dtype=jnp.uint32)

    # advisory cost hint for the XLA scheduler (this kernel is tiny)
    flops = 2 * n * d_pad * d_pad + 2 * n * n * d_pad
    bytes_accessed = 4 * (2 * n * d_pad + n * n + d_pad * d_pad + d_pad) + 4 * n * d_pad
    cost = pl.CostEstimate(flops=flops, transcendentals=0, bytes_accessed=bytes_accessed)

    out_p = pl.pallas_call(
        partial(_gcn2_kernel, apply_dropout=training),
        out_shape=jax.ShapeDtypeStruct((n, d_pad), jnp.float32),
        in_specs=[
            pl.BlockSpec(memory_space=pltpu.MemorySpace.VMEM),  # h (padded)
            pl.BlockSpec(memory_space=pltpu.MemorySpace.VMEM),  # random bits
            pl.BlockSpec(memory_space=pltpu.MemorySpace.VMEM),  # adj
            pl.BlockSpec(memory_space=pltpu.MemorySpace.VMEM),  # W2 (padded, pre-scaled)
            pl.BlockSpec(memory_space=pltpu.MemorySpace.VMEM),  # b2 (padded)
        ],
        out_specs=pl.BlockSpec(memory_space=pltpu.MemorySpace.VMEM),
        cost_estimate=cost,
    )(h_p, bits, adj_n, w2_p, b2_p)

    return out_p[:, :d]


def row_normalize(mx):
    """Row-normalize (matches GCN_1.normalize: zero rows stay zero)."""
    rowsum = mx.sum(axis=1)
    r_inv = np.where(rowsum == 0.0, 0.0, 1.0 / np.where(rowsum == 0.0, 1.0, rowsum))
    return (np.diagflat(r_inv) @ mx).astype(np.float32)


def init_graph_convolution(key, in_features, out_features):
    """Deterministic init matching the standard pygcn GraphConvolution reset."""
    stdv = 1.0 / np.sqrt(out_features)
    kw, kb = jax.random.split(key)
    w = jax.random.uniform(kw, (in_features, out_features), jnp.float32, -stdv, stdv)
    b = jax.random.uniform(kb, (1, out_features), jnp.float32, -stdv, stdv)
    return w, b


if __name__ == "__main__":
    voc_size = 32   # number of graph nodes (vocabulary size)
    emb_dim = 16    # embedding dim

    key = jax.random.PRNGKey(0)
    k_adj, k_g1, k_g2, k_drop = jax.random.split(key, 4)

    # synthetic binary adjacency, then (adj + I) row-normalized as in __init__
    adj_raw = np.asarray(
        jax.random.bernoulli(k_adj, p=0.2, shape=(voc_size, voc_size)),
        dtype=np.float64,
    )
    adj_n = jnp.asarray(row_normalize(adj_raw + np.eye(voc_size)), dtype=jnp.float32)

    # GraphConvolution(voc_size, emb_dim) and GraphConvolution(emb_dim, emb_dim)
    w1, b1 = init_graph_convolution(k_g1, voc_size, emb_dim)
    w2, b2 = init_graph_convolution(k_g2, emb_dim, emb_dim)

    # training-mode forward (dropout active, different RNG stream than torch)
    out = gcn1_forward(adj_n, w1, b1, w2, b2, k_drop, training=True)
    out = jax.block_until_ready(out)
    assert out.shape == (voc_size, emb_dim)
    assert jnp.all(jnp.isfinite(out))

    # eval-mode forward (dropout is a no-op) checked against a pure-JAX reference
    out_eval = jax.block_until_ready(
        gcn1_forward(adj_n, w1, b1, w2, b2, k_drop, training=False)
    )
    h_ref = jnp.maximum(adj_n @ w1 + b1, 0.0)
    ref = adj_n @ (h_ref @ w2) + b2
    assert jnp.allclose(out_eval, ref, atol=1e-5, rtol=1e-5)

    print("KERNEL_OK")
</pallas_src>

<mosaic_0001>
module attributes {stable_mosaic.version = 11 : i64} {
  func.func @_gcn2_kernel(%arg0: memref<32x128xf32, #tpu.memory_space<vmem>>, %arg1: memref<32x128xi32, #tpu.memory_space<vmem>>, %arg2: memref<32x32xf32, #tpu.memory_space<vmem>>, %arg3: memref<128x128xf32, #tpu.memory_space<vmem>>, %arg4: memref<1x128xf32, #tpu.memory_space<vmem>>, %arg5: memref<32x128xf32, #tpu.memory_space<vmem>>) attributes {dimension_semantics = [], scalar_prefetch = 0 : i64, scratch_operands = 0 : i64, tpu.core_type = #tpu.core_type<tc>} {
    %c0 = arith.constant 0 : index
    %c0_0 = arith.constant 0 : index
    %0 = vector.load %arg0[%c0, %c0_0] : memref<32x128xf32, #tpu.memory_space<vmem>>, vector<32x128xf32>
    %c0_1 = arith.constant 0 : index
    %c0_2 = arith.constant 0 : index
    %1 = vector.load %arg1[%c0_1, %c0_2] : memref<32x128xi32, #tpu.memory_space<vmem>>, vector<32x128xi32>
    %c1288490188_i32 = arith.constant 1288490188 : i32
    %2 = vector.broadcast %c1288490188_i32 : i32 to vector<32x128xi32>
    %3 = arith.cmpi uge, %1, %2 : vector<32x128xi32>
    %cst = arith.constant 0.000000e+00 : f32
    %4 = vector.broadcast %cst : f32 to vector<32x128xf32>
    %5 = arith.select %3, %0, %4 : vector<32x128xi1>, vector<32x128xf32>
    %c0_3 = arith.constant 0 : index
    %c0_4 = arith.constant 0 : index
    %6 = vector.load %arg3[%c0_3, %c0_4] : memref<128x128xf32, #tpu.memory_space<vmem>>, vector<128x128xf32>
    %cst_5 = arith.constant dense<0.000000e+00> : vector<32x128xf32>
    %7 = tpu.matmul %5, %6, %cst_5 {dimension_numbers = #tpu.dot_dimension_numbers<[1], [0], [0], [1], [0, 0, 1, 1], [], []>} : vector<32x128xf32>, vector<128x128xf32>, vector<32x128xf32> -> vector<32x128xf32>
    %c0_6 = arith.constant 0 : index
    %c0_7 = arith.constant 0 : index
    %8 = vector.load %arg2[%c0_6, %c0_7] : memref<32x32xf32, #tpu.memory_space<vmem>>, vector<32x32xf32>
    %cst_8 = arith.constant dense<0.000000e+00> : vector<32x128xf32>
    %9 = tpu.matmul %8, %7, %cst_8 {dimension_numbers = #tpu.dot_dimension_numbers<[1], [0], [0], [1], [0, 0, 1, 1], [], []>} : vector<32x32xf32>, vector<32x128xf32>, vector<32x128xf32> -> vector<32x128xf32>
    %c0_9 = arith.constant 0 : index
    %c0_10 = arith.constant 0 : index
    %10 = vector.load %arg4[%c0_9, %c0_10] : memref<1x128xf32, #tpu.memory_space<vmem>>, vector<1x128xf32>
    %11 = vector.broadcast %10 : vector<1x128xf32> to vector<32x128xf32>
    %12 = arith.addf %9, %11 : vector<32x128xf32>
    %c0_11 = arith.constant 0 : index
    %c0_12 = arith.constant 0 : index
    %13 = vector.load %arg5[%c0_11, %c0_12] : memref<32x128xf32, #tpu.memory_space<vmem>>, vector<32x128xf32>
    tpu.vector_store %arg5[%c0_11, %c0_12], %12 {strides = array<i32>} : memref<32x128xf32, #tpu.memory_space<vmem>>, vector<32x128xf32>,
    return
  }
}

</mosaic_0001>

<llo_original>
// kernel: gcn1_forward.1
$region0: #{gcn1_forward.1}
  #allocation0 [shape = 'u32[]', space=smem, size = 0x4, offset = 0x4, fixed_abs, tag = 'smem constant byte address 0x4 - core index']
  #allocation1 [shape = 'u32[144,128]{1,0:T(1,128)}', space=vmem, size = 0x12000, scoped, tag = 'internal scratch']
  %s0 = inlined_call_operand.vmem [shape: f32[32,128], index: 0, kind: input, shape index: {}]
  %s1 = inlined_call_operand.vmem [shape: u32[32,128], index: 1, kind: input, shape index: {}]
  %s2 = inlined_call_operand.vmem [shape: f32[32,32], index: 2, kind: input, shape index: {}]
  %s3 = inlined_call_operand.vmem [shape: f32[128,128], index: 3, kind: input, shape index: {}]
  %s4 = inlined_call_operand.vmem [shape: f32[1,128], index: 4, kind: input, shape index: {}]
  %s5 = inlined_call_operand.vmem [shape: f32[32,128], index: 5, kind: output, shape index: {}]
  %s6 = sld [smem:[#allocation0]]
  $region30: #{gcn1_forward.1} parent=0
    _
  %s8 = ssub.s32 1, %s6
  %s9 = scalar_select 0, %s8, %s6
  // Predicated region
  $region2: #{gcn1_forward.1} parent=0 // pred_check
    _
  $region3: #{gcn1_forward.1} parent=0 // pred_check_branch
    %11 = sbr.rel (0) target = $region5
  $region4: #{gcn1_forward.1} parent=0 // pred_region
    _
  $region5: #{gcn1_forward.1} parent=0 // pred_fallthru
    _
  // Predicated region
  $region6: #{gcn1_forward.1} parent=0 // pred_check
    _
  $region7: #{gcn1_forward.1} parent=0 // pred_check_branch
    %13 = sbr.rel (0) target = $region9
  $region8: #{gcn1_forward.1} parent=0 // pred_region
    _
  $region9: #{gcn1_forward.1} parent=0 // pred_fallthru
    _
  // Predicated region
  $region10: #{gcn1_forward.1} parent=0 // pred_check
    _
  $region11: #{gcn1_forward.1} parent=0 // pred_check_branch
    %15 = sbr.rel (0) target = $region13
  $region12: #{gcn1_forward.1} parent=0 // pred_region
    _
  $region13: #{gcn1_forward.1} parent=0 // pred_fallthru
    _
  // Predicated region
  $region14: #{gcn1_forward.1} parent=0 // pred_check
    _
  $region15: #{gcn1_forward.1} parent=0 // pred_check_branch
    %17 = sbr.rel (0) target = $region17
  $region16: #{gcn1_forward.1} parent=0 // pred_region
    _
  $region17: #{gcn1_forward.1} parent=0 // pred_fallthru
    _
  // Predicated region
  $region18: #{gcn1_forward.1} parent=0 // pred_check
    _
  $region19: #{gcn1_forward.1} parent=0 // pred_check_branch
    %19 = sbr.rel (0) target = $region21
  $region20: #{gcn1_forward.1} parent=0 // pred_region
    _
  $region21: #{gcn1_forward.1} parent=0 // pred_fallthru
    _
  %v20 = vld [vmem:[%s0] sm:$0xff]
  %v21 = vld [vmem:[%s0 + $0x8] sm:$0xff]
  %v22 = vld [vmem:[%s0 + $0x10] sm:$0xff]
  %v23 = vld [vmem:[%s0 + $0x18] sm:$0xff]
  %v24 = vld [vmem:[%s1] sm:$0xff]
  %v25 = vld [vmem:[%s1 + $0x8] sm:$0xff]
  %v26 = vld [vmem:[%s1 + $0x10] sm:$0xff]
  %v27 = vld [vmem:[%s1 + $0x18] sm:$0xff]
  %vm28 = vcmp.ge.u32.totalorder %v24, 1288490188
  %vm29 = vcmp.ge.u32.totalorder %v25, 1288490188
  %vm30 = vcmp.ge.u32.totalorder %v26, 1288490188
  %vm31 = vcmp.ge.u32.totalorder %v27, 1288490188
  %v32 = vsel %vm28, %v20, 0.0
  %v33 = vsel %vm29, %v21, 0.0
  %v34 = vsel %vm30, %v22, 0.0
  %v35 = vsel %vm31, %v23, 0.0
  %v36 = vld [vmem:[%s3] sm:$0xff]
  %v37 = vld [vmem:[%s3 + $0x8] sm:$0xff]
  %v38 = vld [vmem:[%s3 + $0x10] sm:$0xff]
  %v39 = vld [vmem:[%s3 + $0x18] sm:$0xff]
  %v40 = vld [vmem:[%s3 + $0x20] sm:$0xff]
  %v41 = vld [vmem:[%s3 + $0x28] sm:$0xff]
  %v42 = vld [vmem:[%s3 + $0x30] sm:$0xff]
  %v43 = vld [vmem:[%s3 + $0x38] sm:$0xff]
  %v44 = vld [vmem:[%s3 + $0x40] sm:$0xff]
  %v45 = vld [vmem:[%s3 + $0x48] sm:$0xff]
  %v46 = vld [vmem:[%s3 + $0x50] sm:$0xff]
  %v47 = vld [vmem:[%s3 + $0x58] sm:$0xff]
  %v48 = vld [vmem:[%s3 + $0x60] sm:$0xff]
  %v49 = vld [vmem:[%s3 + $0x68] sm:$0xff]
  %v50 = vld [vmem:[%s3 + $0x70] sm:$0xff]
  %v51 = vld [vmem:[%s3 + $0x78] sm:$0xff]
  %52 = vmatprep.subr.mxu0 0.0
  %53 = vmatpush1.msra.mxu0 %v36
  %54 = vmatprep.subr.mxu0 0.0
  %55 = vmatpush1.msra.mxu0 %v37
  %56 = vmatprep.subr.mxu0 0.0
  %57 = vmatpush1.msra.mxu0 %v38
  %58 = vmatprep.subr.mxu0 0.0
  %59 = vmatpush1.msra.mxu0 %v39
  %60 = vmatprep.subr.mxu0 0.0
  %61 = vmatpush1.msra.mxu0 %v40
  %62 = vmatprep.subr.mxu0 0.0
  %63 = vmatpush1.msra.mxu0 %v41
  %64 = vmatprep.subr.mxu0 0.0
  %65 = vmatpush1.msra.mxu0 %v42
  %66 = vmatprep.subr.mxu0 0.0
  %67 = vmatpush1.msra.mxu0 %v43
  %68 = vmatprep.subr.mxu0 0.0
  %69 = vmatpush1.msra.mxu0 %v44
  %70 = vmatprep.subr.mxu0 0.0
  %71 = vmatpush1.msra.mxu0 %v45
  %72 = vmatprep.subr.mxu0 0.0
  %73 = vmatpush1.msra.mxu0 %v46
  %74 = vmatprep.subr.mxu0 0.0
  %75 = vmatpush1.msra.mxu0 %v47
  %76 = vmatprep.subr.mxu0 0.0
  %77 = vmatpush1.msra.mxu0 %v48
  %78 = vmatprep.subr.mxu0 0.0
  %79 = vmatpush1.msra.mxu0 %v49
  %80 = vmatprep.subr.mxu0 0.0
  %81 = vmatpush1.msra.mxu0 %v50
  %82 = vmatprep.subr.mxu0 0.0
  %83 = vmatpush1.msra.mxu0 %v51
  %84 = vmatprep.subr.mxu0 0.0
  %85 = vmatpush1.msra.mxu0 0.0
  %86 = vmatprep.subr.mxu0 0.0
  %87 = vmatpush1.msra.mxu0 0.0
  %88 = vmatprep.subr.mxu0 0.0
  %89 = vmatpush1.msra.mxu0 0.0
  %90 = vmatprep.subr.mxu0 0.0
  %91 = vmatpush1.msra.mxu0 0.0
  %92 = vmatprep.subr.mxu0 0.0
  %93 = vmatpush1.msra.mxu0 0.0
  %94 = vmatprep.subr.mxu0 0.0
  %95 = vmatpush1.msra.mxu0 0.0
  %96 = vmatprep.subr.mxu0 0.0
  %97 = vmatpush1.msra.mxu0 0.0
  %98 = vmatprep.subr.mxu0 0.0
  %99 = vmatpush1.msra.mxu0 0.0
  %100 = vmatprep.subr.mxu0 0.0
  %101 = vmatpush1.msra.mxu0 0.0
  %102 = vmatprep.subr.mxu0 0.0
  %103 = vmatpush1.msra.mxu0 0.0
  %104 = vmatprep.subr.mxu0 0.0
  %105 = vmatpush1.msra.mxu0 0.0
  %106 = vmatprep.subr.mxu0 0.0
  %107 = vmatpush1.msra.mxu0 0.0
  %108 = vmatprep.subr.mxu0 0.0
  %109 = vmatpush1.msra.mxu0 0.0
  %110 = vmatprep.subr.mxu0 0.0
  %111 = vmatpush1.msra.mxu0 0.0
  %112 = vmatprep.subr.mxu0 0.0
  %113 = vmatpush1.msra.mxu0 0.0
  %114 = vmatprep.subr.mxu0 0.0
  %115 = vmatpush1.msra.mxu0 0.0
  %116 = vmatprep.mubr.f32.mxu0 0.0
  %117 = vmatmul.mubr.f32.gmra.mrb[0].mxu0 %v32
  %v118 = vpop.f32.mrb[0].mxu0
  %v119 = vadd.f32 0.0, %v118
  %v120 = vpop.f32.mrb[0].mxu0
  %121 = vmatprep.mubr.f32.mxu0 0.0
  %122 = vmatmul.mubr.f32.gmra.mrb[0].mxu0 %v33
  %v123 = vpop.f32.mrb[0].mxu0
  %v124 = vadd.f32 0.0, %v123
  %v125 = vpop.f32.mrb[0].mxu0
  %126 = vmatprep.mubr.f32.mxu0 0.0
  %127 = vmatmul.mubr.f32.gmra.mrb[0].mxu0 %v34
  %v128 = vpop.f32.mrb[0].mxu0
  %v129 = vadd.f32 0.0, %v128
  %v130 = vpop.f32.mrb[0].mxu0
  %131 = vmatprep.mubr.f32.mxu0 0.0
  %132 = vmatmul.mubr.f32.gmra.mrb[0].mxu0 %v35
  %v133 = vpop.f32.mrb[0].mxu0
  %v134 = vadd.f32 0.0, %v133
  %v135 = vpop.f32.mrb[0].mxu0
  %136 = vdwg.mxu0
  %v137 = vld [vmem:[%s2] sm:$0xff]
  %v138 = vld [vmem:[%s2 + $0x8] sm:$0xff]
  %v139 = vld [vmem:[%s2 + $0x10] sm:$0xff]
  %v140 = vld [vmem:[%s2 + $0x18] sm:$0xff]
  %v141 = vld [vmem:[%s4] sm:$0x1]
  %v143 = vlaneseq
  %v144 = vshrl.u32 %v143, 7
  %v145 = vsub.s32 0, %v144
  %v146 = vrot.slane %v141, %v145
  %vm148 = vcmask 261120
  %v150 = vsel %vm148, %v137, 0
  %v153 = vsel %vm148, %v138, 0
  %v156 = vsel %vm148, %v139, 0
  %v159 = vsel %vm148, %v140, 0
  %161 = vmatprep.subr.mxu0 0.0
  %162 = vmatpush1.msra.mxu0 %v119
  %163 = vmatprep.subr.mxu0 0.0
  %164 = vmatpush1.msra.mxu0 %v124
  %165 = vmatprep.subr.mxu0 0.0
  %166 = vmatpush1.msra.mxu0 %v129
  %167 = vmatprep.subr.mxu0 0.0
  %168 = vmatpush1.msra.mxu0 %v134
  %169 = vmatprep.subr.mxu0 0.0
  %170 = vmatpush1.msra.mxu0 0.0
  %171 = vmatprep.subr.mxu0 0.0
  %172 = vmatpush1.msra.mxu0 0.0
  %173 = vmatprep.subr.mxu0 0.0
  %174 = vmatpush1.msra.mxu0 0.0
  %175 = vmatprep.subr.mxu0 0.0
  %176 = vmatpush1.msra.mxu0 0.0
  %177 = vmatprep.subr.mxu0 0.0
  %178 = vmatpush1.msra.mxu0 0.0
  %179 = vmatprep.subr.mxu0 0.0
  %180 = vmatpush1.msra.mxu0 0.0
  %181 = vmatprep.subr.mxu0 0.0
  %182 = vmatpush1.msra.mxu0 0.0
  %183 = vmatprep.subr.mxu0 0.0
  %184 = vmatpush1.msra.mxu0 0.0
  %185 = vmatprep.subr.mxu0 0.0
  %186 = vmatpush1.msra.mxu0 0.0
  %187 = vmatprep.subr.mxu0 0.0
  %188 = vmatpush1.msra.mxu0 0.0
  %189 = vmatprep.subr.mxu0 0.0
  %190 = vmatpush1.msra.mxu0 0.0
  %191 = vmatprep.subr.mxu0 0.0
  %192 = vmatpush1.msra.mxu0 0.0
  %193 = vmatprep.subr.mxu0 0.0
  %194 = vmatpush1.msra.mxu0 0.0
  %195 = vmatprep.subr.mxu0 0.0
  %196 = vmatpush1.msra.mxu0 0.0
  %197 = vmatprep.subr.mxu0 0.0
  %198 = vmatpush1.msra.mxu0 0.0
  %199 = vmatprep.subr.mxu0 0.0
  %200 = vmatpush1.msra.mxu0 0.0
  %201 = vmatprep.subr.mxu0 0.0
  %202 = vmatpush1.msra.mxu0 0.0
  %203 = vmatprep.subr.mxu0 0.0
  %204 = vmatpush1.msra.mxu0 0.0
  %205 = vmatprep.subr.mxu0 0.0
  %206 = vmatpush1.msra.mxu0 0.0
  %207 = vmatprep.subr.mxu0 0.0
  %208 = vmatpush1.msra.mxu0 0.0
  %209 = vmatprep.subr.mxu0 0.0
  %210 = vmatpush1.msra.mxu0 0.0
  %211 = vmatprep.subr.mxu0 0.0
  %212 = vmatpush1.msra.mxu0 0.0
  %213 = vmatprep.subr.mxu0 0.0
  %214 = vmatpush1.msra.mxu0 0.0
  %215 = vmatprep.subr.mxu0 0.0
  %216 = vmatpush1.msra.mxu0 0.0
  %217 = vmatprep.subr.mxu0 0.0
  %218 = vmatpush1.msra.mxu0 0.0
  %219 = vmatprep.subr.mxu0 0.0
  %220 = vmatpush1.msra.mxu0 0.0
  %221 = vmatprep.subr.mxu0 0.0
  %222 = vmatpush1.msra.mxu0 0.0
  %223 = vmatprep.subr.mxu0 0.0
  %224 = vmatpush1.msra.mxu0 0.0
  %225 = vmatprep.mubr.f32.mxu0 0.0
  %226 = vmatmul.mubr.f32.gmra.mrb[0].mxu0 %v150
  %v227 = vpop.f32.mrb[0].mxu0
  %v228 = vadd.f32 %v146, %v227
  %v229 = vpop.f32.mrb[0].mxu0
  %230 = vmatprep.mubr.f32.mxu0 0.0
  %231 = vmatmul.mubr.f32.gmra.mrb[0].mxu0 %v153
  %v232 = vpop.f32.mrb[0].mxu0
  %v233 = vadd.f32 %v146, %v232
  %v234 = vpop.f32.mrb[0].mxu0
  %235 = vmatprep.mubr.f32.mxu0 0.0
  %236 = vmatmul.mubr.f32.gmra.mrb[0].mxu0 %v156
  %v237 = vpop.f32.mrb[0].mxu0
  %v238 = vadd.f32 %v146, %v237
  %v239 = vpop.f32.mrb[0].mxu0
  %240 = vmatprep.mubr.f32.mxu0 0.0
  %241 = vmatmul.mubr.f32.gmra.mrb[0].mxu0 %v159
  %v242 = vpop.f32.mrb[0].mxu0
  %v243 = vadd.f32 %v146, %v242
  %v244 = vpop.f32.mrb[0].mxu0
  %245 = vdwg.mxu0
  %246 = vst [vmem:[%s5] sm:$0xff] %v228
  %247 = vst [vmem:[%s5 + $0x8] sm:$0xff] %v233
  %248 = vst [vmem:[%s5 + $0x10] sm:$0xff] %v238
  %249 = vst [vmem:[%s5 + $0x18] sm:$0xff] %v243
  // Predicated region
  $region22: #{gcn1_forward.1} parent=0 // pred_check
    _
  $region23: #{gcn1_forward.1} parent=0 // pred_check_branch
    %251 = sbr.rel (0) target = $region25
  $region24: #{gcn1_forward.1} parent=0 // pred_region
    _
  $region25: #{gcn1_forward.1} parent=0 // pred_fallthru
    _
  // Predicated region
  $region26: #{gcn1_forward.1} parent=0 // pred_check
    _
  $region27: #{gcn1_forward.1} parent=0 // pred_check_branch
    %253 = sbr.rel (0) target = $region29
  $region28: #{gcn1_forward.1} parent=0 // pred_region
    _
  $region29: #{gcn1_forward.1} parent=0 // pred_fallthru
    _

</llo_original>
